<compile_context>
chip_gen: v5e
topology: v5e:2x2
jax: 0.10.0
libtpu: 0.0.40
codegen_flags: <defaults>
</compile_context>

<pallas_src>
import functools

import jax
import jax.numpy as jnp
from jax.experimental import pallas as pl
from jax.experimental.pallas import tpu as pltpu

_LANE = 128
_TB_MAX = 2048            # batch rows per grid step (overhead-amortizing tile)
_NEG_LARGE = -1e30        # baked into padded output-bias columns (f32 accum)


def _round_up(x, m):
    return (x + m - 1) // m * m


def _choose_tb(b):
    """Batch tile: big enough to amortize per-step overhead, and (when there is
    enough work) guaranteeing >= 2 grid steps so v7x's two TensorCores both run."""
    if b < 16:
        return b                                   # single full-batch tile
    half = -(-b // 2)                              # cdiv(b, 2)
    return min(_TB_MAX, _round_up(half, 8))


def _mlp_kernel(n_linear, x_ref, *refs):
    """Fused forward pass on one batch tile.

    refs = (w0_ref, b0_ref, w1_ref, b1_ref, ..., o_ref)
    Weights are (in_pad, out_pad) bf16; biases are (1, out_pad) f32. The first
    n_linear-1 linears get ReLU (+ identity dropout); the last one is the
    lane-padded output layer followed by log_softmax over axis=1.
    """
    o_ref = refs[-1]

    # Cast the f32 input tile to bf16 in-kernel (no wrapper-side cast pass).
    h = x_ref[...].astype(jnp.bfloat16)            # (TB, d_in)
    for i in range(n_linear):
        w = refs[2 * i][...]                       # bf16 (in_pad, out_pad)
        b = refs[2 * i + 1][...]                   # f32  (1, out_pad)
        z = jnp.dot(h, w, preferred_element_type=jnp.float32) + b
        if i < n_linear - 1:
            # ReLU in f32 (v5e has no bf16 VPU); bf16 only for the next MXU pass.
            h = jnp.maximum(z, 0.0).astype(jnp.bfloat16)
        else:
            h = z                                  # f32 logits; padded cols = -1e30

    # log_softmax along axis=1 (numerically stable); padded columns contribute
    # exp(-1e30 - m) == 0 to the sum and never win the max.
    m = jnp.max(h, axis=1, keepdims=True)
    shifted = h - m
    lse = jnp.log(jnp.sum(jnp.exp(shifted), axis=1, keepdims=True))
    o_ref[...] = (shifted - lse).astype(o_ref.dtype)   # bf16 store (lane-dense)


def prepare_params(params, output_size):
    """One-time dtype/layout prep.

    params: list of (W_T(in,out) f32, b(1,out) f32) mirroring nn.Linear.
    Returns (flat_params, out_pad): weights as bf16, biases as f32.
      * Hidden widths below 128 are zero-padded to 128 (zero cols + zero bias,
        with matching zero rows in the next layer) -> lane-dense activations,
        numerics unchanged (ReLU preserves zeros).
      * The last layer is padded to a multiple of 128 with zero weight columns
        and -1e30 bias entries (free log_softmax masking baked into the data).
    """
    n = len(params)
    out_pad = _round_up(output_size, _LANE)
    flat = []
    prev_out_pad = params[0][0].shape[0]           # input dim (not padded)
    for i, (w, bias) in enumerate(params):
        w = jnp.asarray(w, jnp.float32)
        bias = jnp.asarray(bias, jnp.float32).reshape(1, -1)
        d_in, d_out = w.shape

        # Pad input rows to match the previous layer's padded output width.
        if prev_out_pad > d_in:
            w = jnp.pad(w, ((0, prev_out_pad - d_in), (0, 0)))

        # Pad output columns.
        if i == n - 1:
            tgt_out = out_pad
        elif d_out < _LANE:
            tgt_out = _LANE
        else:
            tgt_out = d_out
        if tgt_out > d_out:
            w = jnp.pad(w, ((0, 0), (0, tgt_out - d_out)))
            pad_val = _NEG_LARGE if i == n - 1 else 0.0
            bias = jnp.pad(bias, ((0, 0), (0, tgt_out - d_out)),
                           constant_values=pad_val)

        flat.append(w.astype(jnp.bfloat16))
        flat.append(bias)                          # keep bias in f32
        prev_out_pad = tgt_out
    return flat, out_pad


def mlp_forward(x, flat_params, output_size, out_pad):
    """x: [B, ...] (flattened here, kept in its original dtype).
    flat_params from prepare_params()."""
    n_linear = len(flat_params) // 2
    b = x.shape[0]
    x2d = x.reshape(b, -1)                         # x.view(B, -1); no dtype cast
    d_in = x2d.shape[1]

    tb = _choose_tb(b)
    grid = (pl.cdiv(b, tb),)                       # partial last block allowed

    # x/out tiled along batch; weights & biases resident (constant index_map).
    in_specs = [pl.BlockSpec((tb, d_in), lambda i: (i, 0))]
    for p in flat_params:
        in_specs.append(pl.BlockSpec(p.shape, lambda i: (0, 0)))
    out_specs = pl.BlockSpec((tb, out_pad), lambda i: (i, 0))

    out_dtype = jnp.bfloat16
    flops = 2 * b * sum(
        flat_params[2 * k].shape[0] * flat_params[2 * k].shape[1]
        for k in range(n_linear))
    bytes_accessed = (x2d.size * x2d.dtype.itemsize
                      + sum(p.size * p.dtype.itemsize for p in flat_params)
                      + b * out_pad * jnp.dtype(out_dtype).itemsize)
    cost = pl.CostEstimate(flops=flops,
                           transcendentals=b * (out_pad + 1),
                           bytes_accessed=bytes_accessed)

    out = pl.pallas_call(
        functools.partial(_mlp_kernel, n_linear),
        out_shape=jax.ShapeDtypeStruct((b, out_pad), out_dtype),
        grid=grid,
        in_specs=in_specs,
        out_specs=out_specs,
        compiler_params=pltpu.CompilerParams(
            dimension_semantics=("parallel",),     # megacore / 2-TC on v7x
            vmem_limit_bytes=48 * 1024 * 1024),    # informational; << usage
        cost_estimate=cost,
    )(x2d, *flat_params)

    # Drop lane padding (batch dim is already exact: no wrapper pad was done).
    return out[:, :output_size]


def init_params(key, input_size, hidden_sizes, output_size):
    """Deterministic synthetic init mirroring nn.Linear shapes.

    PyTorch nn.Linear(in, out) stores W:(out, in), b:(out,). We store the
    transpose W_T:(in, out) and b:(1, out) for the kernel.
    """
    sizes = [input_size] + list(hidden_sizes) + [output_size]
    params = []
    for d_in, d_out in zip(sizes[:-1], sizes[1:]):
        kw, kb, key = jax.random.split(key, 3)
        bound = 1.0 / jnp.sqrt(jnp.float32(d_in))
        w_t = jax.random.uniform(kw, (d_in, d_out), jnp.float32, -bound, bound)
        bias = jax.random.uniform(kb, (1, d_out), jnp.float32, -bound, bound)
        params.append((w_t, bias))
    return params


def reference_forward(x, params):
    """Pure-JAX reference mirroring the kernel's bf16-matmul / f32-accumulate
    numerics (dropout in eval mode)."""
    h = x.reshape(x.shape[0], -1).astype(jnp.bfloat16)
    n = len(params)
    for i, (w, bias) in enumerate(params):
        z = jnp.dot(h, w.astype(jnp.bfloat16),
                    preferred_element_type=jnp.float32) + bias.astype(jnp.float32)
        if i < n - 1:
            h = jnp.maximum(z, 0.0).astype(jnp.bfloat16)
        else:
            h = z
    return jax.nn.log_softmax(h, axis=1)


if __name__ == "__main__":
    key = jax.random.PRNGKey(0)
    kx, kp = jax.random.split(key)

    # Small shapes consistent with the module: x is flattened to (B, input_size).
    batch = 8
    x = jax.random.normal(kx, (batch, 4, 4, 4), jnp.float32)   # input_size = 64
    input_size = 4 * 4 * 4
    hidden_sizes = [128, 64]
    output_size = 10

    params = init_params(kp, input_size, hidden_sizes, output_size)
    flat_params, out_pad = prepare_params(params, output_size)   # one-time prep

    out = mlp_forward(x, flat_params, output_size, out_pad)
    out = jax.block_until_ready(out)

    ref = reference_forward(x, params)
    assert out.shape == (batch, output_size)
    # Output is bf16 -> compare against the f32 reference with bf16-level slack.
    assert jnp.allclose(out.astype(jnp.float32), ref, atol=3e-2, rtol=3e-2), \
        "mismatch vs reference"

    print("KERNEL_OK")
</pallas_src>

<mosaic_0001>
module attributes {stable_mosaic.version = 11 : i64} {
  func.func @_mlp_kernel(%arg0: i32, %arg1: memref<8x64xf32, #tpu.memory_space<vmem>>, %arg2: memref<64x128xbf16, #tpu.memory_space<vmem>>, %arg3: memref<1x128xf32, #tpu.memory_space<vmem>>, %arg4: memref<128x128xbf16, #tpu.memory_space<vmem>>, %arg5: memref<1x128xf32, #tpu.memory_space<vmem>>, %arg6: memref<128x128xbf16, #tpu.memory_space<vmem>>, %arg7: memref<1x128xf32, #tpu.memory_space<vmem>>, %arg8: memref<8x128xbf16, #tpu.memory_space<vmem>>) attributes {dimension_semantics = [#tpu.dimension_semantics<parallel>], iteration_bounds = array<i64: 1>, scalar_prefetch = 0 : i64, scratch_operands = 0 : i64, tpu.core_type = #tpu.core_type<tc>, window_params = [{transform_indices = @transform_0, window_bounds = array<i64: 8, 64>}, {pipeline_mode = #tpu.pipeline_mode<synchronous>, transform_indices = @transform_1, window_bounds = array<i64: 64, 128>}, {pipeline_mode = #tpu.pipeline_mode<synchronous>, transform_indices = @transform_2, window_bounds = array<i64: 1, 128>}, {pipeline_mode = #tpu.pipeline_mode<synchronous>, transform_indices = @transform_3, window_bounds = array<i64: 128, 128>}, {pipeline_mode = #tpu.pipeline_mode<synchronous>, transform_indices = @transform_4, window_bounds = array<i64: 1, 128>}, {pipeline_mode = #tpu.pipeline_mode<synchronous>, transform_indices = @transform_5, window_bounds = array<i64: 128, 128>}, {pipeline_mode = #tpu.pipeline_mode<synchronous>, transform_indices = @transform_6, window_bounds = array<i64: 1, 128>}, {transform_indices = @transform_7, window_bounds = array<i64: 8, 128>}]} {
    %c0 = arith.constant 0 : index
    %c0_0 = arith.constant 0 : index
    %0 = vector.load %arg1[%c0, %c0_0] : memref<8x64xf32, #tpu.memory_space<vmem>>, vector<8x64xf32>
    %1 = arith.truncf %0 : vector<8x64xf32> to vector<8x64xbf16>
    %c0_1 = arith.constant 0 : index
    %c0_2 = arith.constant 0 : index
    %2 = vector.load %arg2[%c0_1, %c0_2] : memref<64x128xbf16, #tpu.memory_space<vmem>>, vector<64x128xbf16>
    %c0_3 = arith.constant 0 : index
    %c0_4 = arith.constant 0 : index
    %3 = vector.load %arg3[%c0_3, %c0_4] : memref<1x128xf32, #tpu.memory_space<vmem>>, vector<1x128xf32>
    %cst = arith.constant dense<0.000000e+00> : vector<8x128xf32>
    %4 = tpu.matmul %1, %2, %cst {dimension_numbers = #tpu.dot_dimension_numbers<[1], [0], [0], [1], [0, 0, 1, 1], [], []>} : vector<8x64xbf16>, vector<64x128xbf16>, vector<8x128xf32> -> vector<8x128xf32>
    %5 = vector.broadcast %3 : vector<1x128xf32> to vector<8x128xf32>
    %6 = arith.addf %4, %5 : vector<8x128xf32>
    %cst_5 = arith.constant 0.000000e+00 : f32
    %7 = vector.broadcast %cst_5 : f32 to vector<8x128xf32>
    %8 = arith.maximumf %6, %7 : vector<8x128xf32>
    %9 = arith.truncf %8 : vector<8x128xf32> to vector<8x128xbf16>
    %c0_6 = arith.constant 0 : index
    %c0_7 = arith.constant 0 : index
    %10 = vector.load %arg4[%c0_6, %c0_7] : memref<128x128xbf16, #tpu.memory_space<vmem>>, vector<128x128xbf16>
    %c0_8 = arith.constant 0 : index
    %c0_9 = arith.constant 0 : index
    %11 = vector.load %arg5[%c0_8, %c0_9] : memref<1x128xf32, #tpu.memory_space<vmem>>, vector<1x128xf32>
    %cst_10 = arith.constant dense<0.000000e+00> : vector<8x128xf32>
    %12 = tpu.matmul %9, %10, %cst_10 {dimension_numbers = #tpu.dot_dimension_numbers<[1], [0], [0], [1], [0, 0, 1, 1], [], []>} : vector<8x128xbf16>, vector<128x128xbf16>, vector<8x128xf32> -> vector<8x128xf32>
    %13 = vector.broadcast %11 : vector<1x128xf32> to vector<8x128xf32>
    %14 = arith.addf %12, %13 : vector<8x128xf32>
    %cst_11 = arith.constant 0.000000e+00 : f32
    %15 = vector.broadcast %cst_11 : f32 to vector<8x128xf32>
    %16 = arith.maximumf %14, %15 : vector<8x128xf32>
    %17 = arith.truncf %16 : vector<8x128xf32> to vector<8x128xbf16>
    %c0_12 = arith.constant 0 : index
    %c0_13 = arith.constant 0 : index
    %18 = vector.load %arg6[%c0_12, %c0_13] : memref<128x128xbf16, #tpu.memory_space<vmem>>, vector<128x128xbf16>
    %c0_14 = arith.constant 0 : index
    %c0_15 = arith.constant 0 : index
    %19 = vector.load %arg7[%c0_14, %c0_15] : memref<1x128xf32, #tpu.memory_space<vmem>>, vector<1x128xf32>
    %cst_16 = arith.constant dense<0.000000e+00> : vector<8x128xf32>
    %20 = tpu.matmul %17, %18, %cst_16 {dimension_numbers = #tpu.dot_dimension_numbers<[1], [0], [0], [1], [0, 0, 1, 1], [], []>} : vector<8x128xbf16>, vector<128x128xbf16>, vector<8x128xf32> -> vector<8x128xf32>
    %21 = vector.broadcast %19 : vector<1x128xf32> to vector<8x128xf32>
    %22 = arith.addf %20, %21 : vector<8x128xf32>
    %cst_17 = arith.constant dense<0xFF800000> : vector<8xf32>
    %23 = vector.multi_reduction <maximumf>, %22, %cst_17 [1] : vector<8x128xf32> to vector<8xf32>
    %24 = vector.shape_cast %23 : vector<8xf32> to vector<8x1xf32>
    %25 = vector.broadcast %24 : vector<8x1xf32> to vector<8x128xf32>
    %26 = arith.subf %22, %25 : vector<8x128xf32>
    %27 = math.exp %26 : vector<8x128xf32>
    %cst_18 = arith.constant dense<0.000000e+00> : vector<8xf32>
    %28 = vector.multi_reduction <add>, %27, %cst_18 [1] : vector<8x128xf32> to vector<8xf32>
    %29 = vector.shape_cast %28 : vector<8xf32> to vector<8x1xf32>
    %30 = math.log %29 : vector<8x1xf32>
    %31 = vector.broadcast %30 : vector<8x1xf32> to vector<8x128xf32>
    %32 = arith.subf %26, %31 : vector<8x128xf32>
    %33 = arith.truncf %32 : vector<8x128xf32> to vector<8x128xbf16>
    %c0_19 = arith.constant 0 : index
    %c0_20 = arith.constant 0 : index
    %34 = vector.load %arg8[%c0_19, %c0_20] : memref<8x128xbf16, #tpu.memory_space<vmem>>, vector<8x128xbf16>
    tpu.vector_store %arg8[%c0_19, %c0_20], %33 {strides = array<i32>} : memref<8x128xbf16, #tpu.memory_space<vmem>>, vector<8x128xbf16>,
    return
  }
  func.func @transform_0(%arg0: i32) -> (i32, i32) {
    %c0_i32 = arith.constant 0 : i32
    %c0_i32_0 = arith.constant 0 : i32
    return %arg0, %c0_i32 : i32, i32
  }
  func.func @transform_1(%arg0: i32) -> (i32, i32) {
    %c0_i32 = arith.constant 0 : i32
    %c0_i32_0 = arith.constant 0 : i32
    %c0_i32_1 = arith.constant 0 : i32
    return %c0_i32, %c0_i32_0 : i32, i32
  }
  func.func @transform_2(%arg0: i32) -> (i32, i32) {
    %c0_i32 = arith.constant 0 : i32
    %c0_i32_0 = arith.constant 0 : i32
    %c0_i32_1 = arith.constant 0 : i32
    return %c0_i32, %c0_i32_0 : i32, i32
  }
  func.func @transform_3(%arg0: i32) -> (i32, i32) {
    %c0_i32 = arith.constant 0 : i32
    %c0_i32_0 = arith.constant 0 : i32
    %c0_i32_1 = arith.constant 0 : i32
    return %c0_i32, %c0_i32_0 : i32, i32
  }
  func.func @transform_4(%arg0: i32) -> (i32, i32) {
    %c0_i32 = arith.constant 0 : i32
    %c0_i32_0 = arith.constant 0 : i32
    %c0_i32_1 = arith.constant 0 : i32
    return %c0_i32, %c0_i32_0 : i32, i32
  }
  func.func @transform_5(%arg0: i32) -> (i32, i32) {
    %c0_i32 = arith.constant 0 : i32
    %c0_i32_0 = arith.constant 0 : i32
    %c0_i32_1 = arith.constant 0 : i32
    return %c0_i32, %c0_i32_0 : i32, i32
  }
  func.func @transform_6(%arg0: i32) -> (i32, i32) {
    %c0_i32 = arith.constant 0 : i32
    %c0_i32_0 = arith.constant 0 : i32
    %c0_i32_1 = arith.constant 0 : i32
    return %c0_i32, %c0_i32_0 : i32, i32
  }
  func.func @transform_7(%arg0: i32) -> (i32, i32) {
    %c0_i32 = arith.constant 0 : i32
    %c0_i32_0 = arith.constant 0 : i32
    return %arg0, %c0_i32 : i32, i32
  }
}

</mosaic_0001>

<llo_original>
// kernel: tpu_custom_call.1
$region0: #{tpu_custom_call.1}
  #allocation0 [shape = 'u32[]', space=smem, size = 0x4, offset = 0x4, fixed_abs, tag = 'smem constant byte address 0x4 - core index']
  #allocation1 [shape = 'u32[72,128]{1,0:T(1,128)}', space=vmem, size = 0x9000, scoped, tag = 'internal scratch']
  %s0 = inlined_call_operand.hbm [shape: f32[8,64], index: 0, kind: input, shape index: {}]
  %s1 = inlined_call_operand.hbm [shape: bf16[64,128], index: 1, kind: input, shape index: {}]
  %s2 = inlined_call_operand.vmem [shape: f32[1,128], index: 2, kind: input, shape index: {}]
  %s3 = inlined_call_operand.hbm [shape: bf16[128,128], index: 3, kind: input, shape index: {}]
  %s4 = inlined_call_operand.vmem [shape: f32[1,128], index: 4, kind: input, shape index: {}]
  %s5 = inlined_call_operand.hbm [shape: bf16[128,128], index: 5, kind: input, shape index: {}]
  %s6 = inlined_call_operand.vmem [shape: f32[1,128], index: 6, kind: input, shape index: {}]
  %s7 = inlined_call_operand.hbm [shape: bf16[8,128], index: 7, kind: output, shape index: {}]
  %s8 = sld [smem:[#allocation0]]
  $region54: #{tpu_custom_call.1} parent=0
    _
  %s10 = ssub.s32 1, %s8
  %s11 = scalar_select 0, %s10, %s8
  $region1: #{tpu_custom_call.1} parent=0
    #allocation2 [shape = 'u8[4096]{0}', space=vmem, size = 0x1000, scoped, tag = 'input window, operand 0, single buffered']
    #allocation3 [shape = 's32[1]{0}', space=sflag, size = 0x4, scoped, tag = 'scoped memory for tpu_custom_call.1']
    #allocation4 [shape = 's32[1]{0}', space=sflag, size = 0x4, scoped, tag = 'scoped memory for tpu_custom_call.1']
    #allocation5 [shape = 'u8[16384]{0}', space=vmem, size = 0x4000, scoped, tag = 'input window, operand 1, single buffered']
    #allocation6 [shape = 's32[1]{0}', space=sflag, size = 0x4, scoped, tag = 'scoped memory for tpu_custom_call.1']
    #allocation7 [shape = 'u8[32768]{0}', space=vmem, size = 0x8000, scoped, tag = 'input window, operand 3, single buffered']
    #allocation8 [shape = 'u8[32768]{0}', space=vmem, size = 0x8000, scoped, tag = 'input window, operand 5, single buffered']
    #allocation9 [shape = 's32[1]{0}', space=sflag, size = 0x4, scoped, tag = 'scoped memory for tpu_custom_call.1']
    #allocation10 [shape = 'u8[2048]{0}', space=vmem, size = 0x800, scoped, tag = 'output window, operand 0, single buffered']
    %12 = vsyncpa [#allocation3], 0
    %13 = vsyncpa [#allocation6], 0
    %14 = vsyncpa [#allocation9], 0
    %15 = vsyncpa [#allocation4], 0
    // Predicated region
    $region2: #{tpu_custom_call.1} parent=1 // pred_check
      _
    $region3: #{tpu_custom_call.1} parent=1 // pred_check_branch
      %17 = sbr.rel (0) target = $region5
    $region4: #{tpu_custom_call.1} parent=1 // pred_region
      %19 = vsyncadd [#allocation3], 0
      %s21 = sshll.u32 %s0, 4
      %s22 = int_to_ptr.hbm [resolvable:$true] %s21
      %s23 = sshll.u32 [#allocation2], 4
      %s24 = int_to_ptr.vmem [resolvable:$true] %s23
      %26 = dma.hbm_to_vmem [thread:$0]  %s22, 128, %s24, [#allocation3]
    $region5: #{tpu_custom_call.1} parent=1 // pred_fallthru
      _
    // Predicated region
    $region6: #{tpu_custom_call.1} parent=1 // pred_check
      _
    $region7: #{tpu_custom_call.1} parent=1 // pred_check_branch
      %28 = sbr.rel (0) target = $region9
    $region8: #{tpu_custom_call.1} parent=1 // pred_region
      %30 = vsyncadd [#allocation6], 0
      %s31 = sshll.u32 %s1, 4
      %s32 = int_to_ptr.hbm [resolvable:$true] %s31
      %s33 = sshll.u32 [#allocation5], 4
      %s34 = int_to_ptr.vmem [resolvable:$true] %s33
      %39 = dma.hbm_to_vmem [thread:$0]  %s32, 512, %s34, [#allocation6], 64, 64, 4
    $region9: #{tpu_custom_call.1} parent=1 // pred_fallthru
      _
    // Predicated region
    $region10: #{tpu_custom_call.1} parent=1 // pred_check
      _
    $region11: #{tpu_custom_call.1} parent=1 // pred_check_branch
      %41 = sbr.rel (0) target = $region13
    $region12: #{tpu_custom_call.1} parent=1 // pred_region
      _
    $region13: #{tpu_custom_call.1} parent=1 // pred_fallthru
      _
    // Predicated region
    $region14: #{tpu_custom_call.1} parent=1 // pred_check
      _
    $region15: #{tpu_custom_call.1} parent=1 // pred_check_branch
      %43 = sbr.rel (0) target = $region17
    $region16: #{tpu_custom_call.1} parent=1 // pred_region
      %45 = vsyncadd [#allocation6], 0
      %s46 = sshll.u32 %s3, 4
      %s47 = int_to_ptr.hbm [resolvable:$true] %s46
      %s48 = sshll.u32 [#allocation7], 4
      %s49 = int_to_ptr.vmem [resolvable:$true] %s48
      %54 = dma.hbm_to_vmem [thread:$0]  %s47, 1024, %s49, [#allocation6], 64, 64, 4
    $region17: #{tpu_custom_call.1} parent=1 // pred_fallthru
      _
    // Predicated region
    $region18: #{tpu_custom_call.1} parent=1 // pred_check
      _
    $region19: #{tpu_custom_call.1} parent=1 // pred_check_branch
      %56 = sbr.rel (0) target = $region21
    $region20: #{tpu_custom_call.1} parent=1 // pred_region
      _
    $region21: #{tpu_custom_call.1} parent=1 // pred_fallthru
      _
    // Predicated region
    $region22: #{tpu_custom_call.1} parent=1 // pred_check
      _
    $region23: #{tpu_custom_call.1} parent=1 // pred_check_branch
      %58 = sbr.rel (0) target = $region25
    $region24: #{tpu_custom_call.1} parent=1 // pred_region
      %60 = vsyncadd [#allocation9], 0
      %s61 = sshll.u32 %s5, 4
      %s62 = int_to_ptr.hbm [resolvable:$true] %s61
      %s63 = sshll.u32 [#allocation8], 4
      %s64 = int_to_ptr.vmem [resolvable:$true] %s63
      %69 = dma.hbm_to_vmem [thread:$0]  %s62, 1024, %s64, [#allocation9], 64, 64, 4
    $region25: #{tpu_custom_call.1} parent=1 // pred_fallthru
      _
    // Predicated region
    $region26: #{tpu_custom_call.1} parent=1 // pred_check
      _
    $region27: #{tpu_custom_call.1} parent=1 // pred_check_branch
      %71 = sbr.rel (0) target = $region29
    $region28: #{tpu_custom_call.1} parent=1 // pred_region
      _
    $region29: #{tpu_custom_call.1} parent=1 // pred_fallthru
      _
    // Predicated region
    $region30: #{tpu_custom_call.1} parent=1 // pred_check
      _
    $region31: #{tpu_custom_call.1} parent=1 // pred_check_branch
      %73 = sbr.rel (0) target = $region33
    $region32: #{tpu_custom_call.1} parent=1 // pred_region
      %75 = dma.done [#allocation3], 128
    $region33: #{tpu_custom_call.1} parent=1 // pred_fallthru
      _
    // Predicated region
    $region34: #{tpu_custom_call.1} parent=1 // pred_check
      _
    $region35: #{tpu_custom_call.1} parent=1 // pred_check_branch
      %77 = sbr.rel (0) target = $region37
    $region36: #{tpu_custom_call.1} parent=1 // pred_region
      %79 = dma.done [#allocation6], 512
    $region37: #{tpu_custom_call.1} parent=1 // pred_fallthru
      _
    // Predicated region
    $region38: #{tpu_custom_call.1} parent=1 // pred_check
      _
    $region39: #{tpu_custom_call.1} parent=1 // pred_check_branch
      %81 = sbr.rel (0) target = $region41
    $region40: #{tpu_custom_call.1} parent=1 // pred_region
      %83 = dma.done [#allocation6], 1024
    $region41: #{tpu_custom_call.1} parent=1 // pred_fallthru
      _
    // Predicated region
    $region42: #{tpu_custom_call.1} parent=1 // pred_check
      _
    $region43: #{tpu_custom_call.1} parent=1 // pred_check_branch
      %85 = sbr.rel (0) target = $region45
    $region44: #{tpu_custom_call.1} parent=1 // pred_region
      %87 = dma.done [#allocation9], 1024
    $region45: #{tpu_custom_call.1} parent=1 // pred_fallthru
      _
    %v89 = vld [vmem:[#allocation2] sm:$0xff]
    %v90 = vpack.c.bf16 %v89, %v89
    %v91 = vld [vmem:[#allocation5] sm:$0xf]
    %v92 = vld [vmem:[#allocation5 + $0x4] sm:$0xf]
    %v93 = vld [vmem:[#allocation5 + $0x8] sm:$0xf]
    %v94 = vld [vmem:[#allocation5 + $0xc] sm:$0xf]
    %v95 = vld [vmem:[#allocation5 + $0x10] sm:$0xf]
    %v96 = vld [vmem:[#allocation5 + $0x14] sm:$0xf]
    %v97 = vld [vmem:[#allocation5 + $0x18] sm:$0xf]
    %v98 = vld [vmem:[#allocation5 + $0x1c] sm:$0xf]
    %v99 = vld [vmem:[%s2] sm:$0x1]
    %v101 = vperm.slane %v99, 0
    %v111 = vunpack.c.l.b16 %v91
    %v112 = vunpack.c.l.b16 %v92
    %v113 = vunpack.c.l.b16 %v93
    %v114 = vunpack.c.l.b16 %v94
    %v115 = vunpack.c.l.b16 %v95
    %v116 = vunpack.c.l.b16 %v96
    %v117 = vunpack.c.l.b16 %v97
    %v118 = vunpack.c.l.b16 %v98
    %v119 = vpack.c.b16 %v112, %v111
    %v120 = vpack.c.b16 %v114, %v113
    %v121 = vpack.c.b16 %v116, %v115
    %v122 = vpack.c.b16 %v118, %v117
    %vm127 = vcmask 523264
    %v129 = vsel %vm127, %v90, 0
    %131 = vmatpush.bf16.msra.mxu0 0
    %132 = vmatpush.bf16.msra.mxu0 0
    %133 = vmatpush.bf16.msra.mxu0 0
    %134 = vmatpush.bf16.msra.mxu0 0
    %135 = vmatpush.bf16.msra.mxu0 %v122
    %136 = vmatpush.bf16.msra.mxu0 %v121
    %137 = vmatpush.bf16.msra.mxu0 %v120
    %138 = vmatpush.bf16.msra.mxu0 %v119
    %139 = vmatmul.bf16.gmra.mxu0 %v129
    %v140 = vpop.f32.mrf.mxu0
    %v141 = vadd.f32 %v101, %v140
    %v142 = vpop.f32.mrf.mxu0
    %143 = vdwg.mxu0
    %v144 = vmax.f32 %v141, 0.0
    %v145 = vpack.c.bf16 %v144, %v144
    %v146 = vld [vmem:[#allocation7] sm:$0xf]
    %v147 = vld [vmem:[#allocation7 + $0x4] sm:$0xf]
    %v148 = vld [vmem:[#allocation7 + $0x8] sm:$0xf]
    %v149 = vld [vmem:[#allocation7 + $0xc] sm:$0xf]
    %v150 = vld [vmem:[#allocation7 + $0x10] sm:$0xf]
    %v151 = vld [vmem:[#allocation7 + $0x14] sm:$0xf]
    %v152 = vld [vmem:[#allocation7 + $0x18] sm:$0xf]
    %v153 = vld [vmem:[#allocation7 + $0x1c] sm:$0xf]
    %v154 = vld [vmem:[#allocation7 + $0x20] sm:$0xf]
    %v155 = vld [vmem:[#allocation7 + $0x24] sm:$0xf]
    %v156 = vld [vmem:[#allocation7 + $0x28] sm:$0xf]
    %v157 = vld [vmem:[#allocation7 + $0x2c] sm:$0xf]
    %v158 = vld [vmem:[#allocation7 + $0x30] sm:$0xf]
    %v159 = vld [vmem:[#allocation7 + $0x34] sm:$0xf]
    %v160 = vld [vmem:[#allocation7 + $0x38] sm:$0xf]
    %v161 = vld [vmem:[#allocation7 + $0x3c] sm:$0xf]
    %v162 = vld [vmem:[%s4] sm:$0x1]
    %v164 = vperm.slane %v162, 0
    %v182 = vunpack.c.l.b16 %v146
    %v183 = vunpack.c.l.b16 %v147
    %v184 = vunpack.c.l.b16 %v148
    %v185 = vunpack.c.l.b16 %v149
    %v186 = vunpack.c.l.b16 %v150
    %v187 = vunpack.c.l.b16 %v151
    %v188 = vunpack.c.l.b16 %v152
    %v189 = vunpack.c.l.b16 %v153
    %v190 = vunpack.c.l.b16 %v154
    %v191 = vunpack.c.l.b16 %v155
    %v192 = vunpack.c.l.b16 %v156
    %v193 = vunpack.c.l.b16 %v157
    %v194 = vunpack.c.l.b16 %v158
    %v195 = vunpack.c.l.b16 %v159
    %v196 = vunpack.c.l.b16 %v160
    %v197 = vunpack.c.l.b16 %v161
    %v198 = vpack.c.b16 %v183, %v182
    %v199 = vpack.c.b16 %v185, %v184
    %v200 = vpack.c.b16 %v187, %v186
    %v201 = vpack.c.b16 %v189, %v188
    %v202 = vpack.c.b16 %v191, %v190
    %v203 = vpack.c.b16 %v193, %v192
    %v204 = vpack.c.b16 %v195, %v194
    %v205 = vpack.c.b16 %v197, %v196
    %214 = vmatpush.bf16.msra.mxu0 %v205
    %215 = vmatpush.bf16.msra.mxu0 %v204
    %216 = vmatpush.bf16.msra.mxu0 %v203
    %217 = vmatpush.bf16.msra.mxu0 %v202
    %218 = vmatpush.bf16.msra.mxu0 %v201
    %219 = vmatpush.bf16.msra.mxu0 %v200
    %220 = vmatpush.bf16.msra.mxu0 %v199
    %221 = vmatpush.bf16.msra.mxu0 %v198
    %222 = vmatmul.bf16.gmra.mxu0 %v145
    %v223 = vpop.f32.mrf.mxu0
    %v224 = vadd.f32 %v164, %v223
    %v225 = vpop.f32.mrf.mxu0
    %226 = vdwg.mxu0
    %v227 = vmax.f32 %v224, 0.0
    %v228 = vpack.c.bf16 %v227, %v227
    %v229 = vld [vmem:[#allocation8] sm:$0xf]
    %v230 = vld [vmem:[#allocation8 + $0x4] sm:$0xf]
    %v231 = vld [vmem:[#allocation8 + $0x8] sm:$0xf]
    %v232 = vld [vmem:[#allocation8 + $0xc] sm:$0xf]
    %v233 = vld [vmem:[#allocation8 + $0x10] sm:$0xf]
    %v234 = vld [vmem:[#allocation8 + $0x14] sm:$0xf]
    %v235 = vld [vmem:[#allocation8 + $0x18] sm:$0xf]
    %v236 = vld [vmem:[#allocation8 + $0x1c] sm:$0xf]
    %v237 = vld [vmem:[#allocation8 + $0x20] sm:$0xf]
    %v238 = vld [vmem:[#allocation8 + $0x24] sm:$0xf]
    %v239 = vld [vmem:[#allocation8 + $0x28] sm:$0xf]
    %v240 = vld [vmem:[#allocation8 + $0x2c] sm:$0xf]
    %v241 = vld [vmem:[#allocation8 + $0x30] sm:$0xf]
    %v242 = vld [vmem:[#allocation8 + $0x34] sm:$0xf]
    %v243 = vld [vmem:[#allocation8 + $0x38] sm:$0xf]
    %v244 = vld [vmem:[#allocation8 + $0x3c] sm:$0xf]
    %v245 = vld [vmem:[%s6] sm:$0x1]
    %v247 = vperm.slane %v245, 0
    %v265 = vunpack.c.l.b16 %v229
    %v266 = vunpack.c.l.b16 %v230
    %v267 = vunpack.c.l.b16 %v231
    %v268 = vunpack.c.l.b16 %v232
    %v269 = vunpack.c.l.b16 %v233
    %v270 = vunpack.c.l.b16 %v234
    %v271 = vunpack.c.l.b16 %v235
    %v272 = vunpack.c.l.b16 %v236
    %v273 = vunpack.c.l.b16 %v237
    %v274 = vunpack.c.l.b16 %v238
    %v275 = vunpack.c.l.b16 %v239
    %v276 = vunpack.c.l.b16 %v240
    %v277 = vunpack.c.l.b16 %v241
    %v278 = vunpack.c.l.b16 %v242
    %v279 = vunpack.c.l.b16 %v243
    %v280 = vunpack.c.l.b16 %v244
    %v281 = vpack.c.b16 %v266, %v265
    %v282 = vpack.c.b16 %v268, %v267
    %v283 = vpack.c.b16 %v270, %v269
    %v284 = vpack.c.b16 %v272, %v271
    %v285 = vpack.c.b16 %v274, %v273
    %v286 = vpack.c.b16 %v276, %v275
    %v287 = vpack.c.b16 %v278, %v277
    %v288 = vpack.c.b16 %v280, %v279
    %297 = vmatpush.bf16.msra.mxu0 %v288
    %298 = vmatpush.bf16.msra.mxu0 %v287
    %299 = vmatpush.bf16.msra.mxu0 %v286
    %300 = vmatpush.bf16.msra.mxu0 %v285
    %301 = vmatpush.bf16.msra.mxu0 %v284
    %302 = vmatpush.bf16.msra.mxu0 %v283
    %303 = vmatpush.bf16.msra.mxu0 %v282
    %304 = vmatpush.bf16.msra.mxu0 %v281
    %305 = vmatmul.bf16.gmra.mxu0 %v228
    %v306 = vpop.f32.mrf.mxu0
    %v307 = vadd.f32 %v247, %v306
    %v308 = vpop.f32.mrf.mxu0
    %309 = vdwg.mxu0
    %310 = vmax.xlane.f32.xlu0 %v307
    %v311 = vpop.xlane.xlu0 %310
    %v312 = vsub.f32 %v307, %v311
    %v313 = vmul.f32 %v312, 1.442695
    %v314 = vpow.pop %v313
    %315 = vadd.xlane.f32.xlu0 %v314
    %v316 = vpop.xlane.xlu0 %315
    %v317 = vlog2.pop %v316
    %v318 = vmul.f32 %v317, 0.6931472
    %v319 = vsub.f32 %v312, %v318
    %v320 = vpack.c.bf16 %v319, %v319
    %321 = vst [vmem:[#allocation10] sm:$0xf] %v320
    // Predicated region
    $region46: #{tpu_custom_call.1} parent=1 // pred_check
      _
    $region47: #{tpu_custom_call.1} parent=1 // pred_check_branch
      %323 = sbr.rel (0) target = $region49
    $region48: #{tpu_custom_call.1} parent=1 // pred_region
      %325 = vsyncadd [#allocation4], 0
      %s327 = sshll.u32 [#allocation10], 4
      %s328 = int_to_ptr.vmem [resolvable:$true] %s327
      %s329 = sshll.u32 %s7, 4
      %s330 = int_to_ptr.hbm [resolvable:$true] %s329
      %332 = dma.vmem_to_hbm [thread:$0]  %s328, 64, %s330, [#allocation4]
    $region49: #{tpu_custom_call.1} parent=1 // pred_fallthru
      _
    // Predicated region
    $region50: #{tpu_custom_call.1} parent=1 // pred_check
      _
    $region51: #{tpu_custom_call.1} parent=1 // pred_check_branch
      %334 = sbr.rel (0) target = $region53
    $region52: #{tpu_custom_call.1} parent=1 // pred_region
      %336 = dma.done [#allocation4], 64
    $region53: #{tpu_custom_call.1} parent=1 // pred_fallthru
      _
    %337 = vsyncpa [#allocation3], 1
    %338 = vsyncpa [#allocation6], 1
    %339 = vsyncpa [#allocation9], 1
    %340 = vsyncpa [#allocation4], 1

</llo_original>
